<compile_context>
chip_gen: v6e
topology: v6e:2x2x1
jax: 0.10.0
libtpu: 0.0.40
codegen_flags: <defaults>
</compile_context>

<pallas_src>
import functools

import jax
import jax.numpy as jnp
from jax.experimental import pallas as pl
from jax.experimental.pallas import tpu as pltpu


def _l1_linear_scaled_kernel(x_ref, w_ref, scale_ref, bias_ref, o_ref, acc_ref,
                             *, posneg):
    k = pl.program_id(2)

    @pl.when(k == 0)
    def _init():
        acc_ref[...] = jnp.zeros_like(acc_ref)

    if posneg:
        # Pos/neg weight difference on the VPU, in the operand dtype (bf16 on
        # the default path), hidden under the MXU matmul.
        w = w_ref[0] - w_ref[1]                                   # [tk, tn]
    else:
        w = w_ref[...]                                            # pre-diffed
    acc_ref[...] += jnp.dot(x_ref[...], w,
                            preferred_element_type=jnp.float32)   # [tm, tn] f32

    @pl.when(k == pl.num_programs(2) - 1)
    def _epilogue():
        out = acc_ref[...] * scale_ref[...] + bias_ref[...]
        o_ref[...] = out.astype(o_ref.dtype)


def _round_up(x, m):
    return (x + m - 1) // m * m


def _vmem_limit_bytes():
    # Generation-aware VMEM limit: ~3/4 of physical, capped at 100 MiB.
    # v5e/v6e (128 MiB phys) -> 96 MiB; v7x (64 MiB phys) -> 48 MiB, leaving
    # headroom for the internal diff temporary and compiler scratch.
    try:
        info = pltpu.get_tpu_info()
        cap = int(getattr(info, "vmem_capacity_bytes", 64 * 1024 * 1024))
    except Exception:
        cap = 64 * 1024 * 1024
    return min(cap * 3 // 4, 100 * 1024 * 1024)


def l1_linear_scaled(x, weights_pos_neg, scale, bias, *, bias_factor=1.0,
                     tm=512, tn=256, tk=512, use_bf16=True):
    """x: [M, K]; weights_pos_neg: [2K, N]; scale, bias: [N] -> [M, N]."""
    M, K = x.shape
    twoK, N = weights_pos_neg.shape
    assert twoK == 2 * K
    out_dtype = x.dtype
    compute_dtype = jnp.bfloat16 if use_bf16 else x.dtype
    c_itemsize = jnp.dtype(compute_dtype).itemsize

    # Tile sizes: clamp caps to the (padded) problem size; lane dim multiple of
    # 128, sublane dim multiple of 8 (16 for bf16 packing).
    sub = 16 if use_bf16 else 8
    tm = min(tm, _round_up(M, sub))
    tn = min(tn, _round_up(N, 128))
    tk = min(tk, _round_up(K, 128))
    Mp, Np, Kp = _round_up(M, tm), _round_up(N, tn), _round_up(K, tk)

    # v7x megacore: avoid a (1,1) parallel grid when N is wide enough to split
    # (no-op on single-TC v5e/v6e; blocks stay lane-dense: tn % 128 == 0).
    if Mp // tm == 1 and Np // tn == 1 and Np >= 256 and (Np // 2) % 128 == 0:
        tn = Np // 2

    grid_i, grid_j, grid_k = Mp // tm, Np // tn, Kp // tk

    # Weight path selection: the [2,K,N] array is re-streamed once per i tile.
    # When grid_i > 2, pre-diff once in HBM (halves per-call weight reads and
    # removes the in-kernel [tk,tn] temp); otherwise keep the in-kernel diff
    # (cheaper for single-use, small-M calls: 2KN read vs 3KN+ total).
    w3 = weights_pos_neg.reshape(2, K, N)        # free row-major reshape
    prediff = grid_i > 2

    if prediff:
        w_in = (w3[0] - w3[1]).astype(compute_dtype)              # [K, N]
        if Kp != K or Np != N:
            w_in = jnp.pad(w_in, ((0, Kp - K), (0, Np - N)))
        w_spec = pl.BlockSpec((tk, tn), lambda i, j, k: (k, j))
        w_stream_bytes = K * N * c_itemsize
    else:
        w_in = w3.astype(compute_dtype)                           # [2, K, N]
        if Kp != K or Np != N:
            w_in = jnp.pad(w_in, ((0, 0), (0, Kp - K), (0, Np - N)))
        # NOTE(v5e): if weight DMA remains exposed after the tm increase, add
        # pipeline_mode=pl.Buffered(3) here (sweep on hardware).
        w_spec = pl.BlockSpec((2, tk, tn), lambda i, j, k: (0, k, j))
        w_stream_bytes = 2 * K * N * c_itemsize

    x_in = x.astype(compute_dtype)
    if Mp != M or Kp != K:
        x_in = jnp.pad(x_in, ((0, Mp - M), (0, Kp - K)))

    # Fold bias_factor into the bias once; scale/bias stay f32 for the epilogue.
    bias_eff = bias * jnp.asarray(bias_factor, dtype=bias.dtype)
    scale_p = scale if Np == N else jnp.pad(scale, (0, Np - N))
    bias_p = bias_eff if Np == N else jnp.pad(bias_eff, (0, Np - N))

    cost = pl.CostEstimate(
        flops=int(2 * M * N * K),
        transcendentals=0,
        bytes_accessed=int(M * K * c_itemsize * grid_j
                           + w_stream_bytes * grid_i
                           + M * N * jnp.dtype(out_dtype).itemsize),
    )

    kernel = functools.partial(_l1_linear_scaled_kernel, posneg=not prediff)

    out = pl.pallas_call(
        kernel,
        out_shape=jax.ShapeDtypeStruct((Mp, Np), out_dtype),
        grid_spec=pltpu.PrefetchScalarGridSpec(
            num_scalar_prefetch=0,
            grid=(grid_i, grid_j, grid_k),
            in_specs=[
                pl.BlockSpec((tm, tk), lambda i, j, k: (i, k)),      # X tile
                w_spec,                                              # W tile
                pl.BlockSpec((1, tn), lambda i, j, k: (0, j)),       # scale
                pl.BlockSpec((1, tn), lambda i, j, k: (0, j)),       # bias*bf
            ],
            out_specs=pl.BlockSpec((tm, tn), lambda i, j, k: (i, j)),
            scratch_shapes=[pltpu.VMEM((tm, tn), jnp.float32)],
        ),
        compiler_params=pltpu.CompilerParams(
            dimension_semantics=("parallel", "parallel", "arbitrary"),
            vmem_limit_bytes=_vmem_limit_bytes(),
        ),
        cost_estimate=cost,
    )(x_in, w_in, scale_p.reshape(1, Np), bias_p.reshape(1, Np))

    if Mp != M or Np != N:
        out = out[:M, :N]
    return out


def init_params(key, input_width, output_width, dtype=jnp.float32):
    # Mirror Simplex.__init__: uniform -> log(x + 1e-15) -> normalize along dim 0.
    data = jax.random.uniform(key, (input_width * 2, output_width), dtype=dtype)
    data = jnp.log(data + 1e-15)
    data = data / jnp.sum(data, axis=0, keepdims=True)
    weights_pos_neg = data
    bias = jnp.zeros((output_width,), dtype=dtype)
    scale = jnp.ones((output_width,), dtype=dtype)
    return weights_pos_neg, bias, scale


def reference(x, weights_pos_neg, scale, bias, *, bias_factor=1.0):
    K = x.shape[1]
    raw_w = weights_pos_neg[:K, :] - weights_pos_neg[K:, :]
    return jnp.matmul(x, raw_w) * scale + bias.reshape(1, -1) * bias_factor


if __name__ == "__main__":
    key = jax.random.PRNGKey(0)
    k1, k2, k3, k4 = jax.random.split(key, 4)

    # Small shapes matching the module's typical sizes.
    batch, input_width, output_width = 8, 32, 32
    x = jax.random.normal(k1, (batch, input_width), dtype=jnp.float32)
    weights_pos_neg, bias, scale = init_params(k2, input_width, output_width)
    scale = scale * (1.0 + 0.1 * jax.random.normal(k3, scale.shape))
    bias = 0.05 * jax.random.normal(k4, bias.shape)
    ref = reference(x, weights_pos_neg, scale, bias, bias_factor=1.0)

    # Case 1: f32 escape hatch -- exact-ish, tight tolerance.
    out_f32 = jax.block_until_ready(
        l1_linear_scaled(x, weights_pos_neg, scale, bias, use_bf16=False))
    assert out_f32.shape == (batch, output_width)
    assert jnp.allclose(out_f32, ref, atol=1e-5, rtol=1e-5), "mismatch (f32)"

    # Case 2: default bf16 MXU path (bf16 operands, f32 accumulate) -- looser tol.
    out_bf16 = jax.block_until_ready(
        l1_linear_scaled(x, weights_pos_neg, scale, bias))
    assert jnp.allclose(out_bf16, ref, atol=5e-2, rtol=5e-2), "mismatch (bf16)"

    # Case 3: multi-tile (M, N, K) grid exercising the accumulator and the
    # pre-diffed weight path (grid_i > 2 -> raw weights computed once in HBM).
    M2, K2, N2 = 256, 384, 256
    ka, kb = jax.random.split(k1)
    x2 = jax.random.normal(ka, (M2, K2), dtype=jnp.float32)
    w2, b2, s2 = init_params(kb, K2, N2)
    ref2 = reference(x2, w2, s2, b2, bias_factor=0.5)
    out2 = jax.block_until_ready(
        l1_linear_scaled(x2, w2, s2, b2, bias_factor=0.5,
                         tm=64, tn=128, tk=128, use_bf16=False))
    assert out2.shape == (M2, N2)
    assert jnp.allclose(out2, ref2, atol=1e-4, rtol=1e-4), "mismatch (tiled f32)"

    # Case 3b: same problem through the default bf16 + in-kernel pos/neg path
    # (tm clamps to M -> single i tile; v7x heuristic splits tn for 2 TCs).
    out3 = jax.block_until_ready(
        l1_linear_scaled(x2, w2, s2, b2, bias_factor=0.5))
    assert jnp.allclose(out3, ref2, atol=5e-2, rtol=5e-2), "mismatch (tiled bf16)"

    # TODO(synk): training-mode multiplicative weight noise (torch.rand_like)
    # not implemented; forward here matches eval-mode semantics.
    print("KERNEL_OK")
</pallas_src>

<mosaic_0001>
module attributes {stable_mosaic.version = 11 : i64} {
  func.func @_l1_linear_scaled_kernel(%arg0: i32, %arg1: i32, %arg2: i32, %arg3: memref<8x128xf32, #tpu.memory_space<vmem>>, %arg4: memref<2x128x128xf32, #tpu.memory_space<vmem>>, %arg5: memref<1x128xf32, #tpu.memory_space<vmem>>, %arg6: memref<1x128xf32, #tpu.memory_space<vmem>>, %arg7: memref<8x128xf32, #tpu.memory_space<vmem>>, %arg8: memref<8x128xf32, #tpu.memory_space<vmem>>) attributes {dimension_semantics = [#tpu.dimension_semantics<parallel>, #tpu.dimension_semantics<parallel>, #tpu.dimension_semantics<arbitrary>], iteration_bounds = array<i64: 1, 1, 1>, scalar_prefetch = 0 : i64, scratch_operands = 1 : i64, tpu.core_type = #tpu.core_type<tc>, window_params = [{transform_indices = @transform_0, window_bounds = array<i64: 8, 128>}, {transform_indices = @transform_1, window_bounds = array<i64: 2, 128, 128>}, {transform_indices = @transform_2, window_bounds = array<i64: 1, 128>}, {transform_indices = @transform_3, window_bounds = array<i64: 1, 128>}, {transform_indices = @transform_4, window_bounds = array<i64: 8, 128>}]} {
    %c0_i32 = arith.constant 0 : i32
    %0 = arith.cmpi eq, %arg2, %c0_i32 : i32
    %1 = arith.extui %0 : i1 to i32
    %c0_i32_0 = arith.constant 0 : i32
    %2 = arith.cmpi ne, %1, %c0_i32_0 : i32
    scf.if %2 {
      %cst_13 = arith.constant 0.000000e+00 : f32
      %16 = vector.broadcast %cst_13 : f32 to vector<8x128xf32>
      %c0_14 = arith.constant 0 : index
      %c0_15 = arith.constant 0 : index
      %17 = vector.load %arg8[%c0_14, %c0_15] : memref<8x128xf32, #tpu.memory_space<vmem>>, vector<8x128xf32>
      tpu.vector_store %arg8[%c0_14, %c0_15], %16 {strides = array<i32>} : memref<8x128xf32, #tpu.memory_space<vmem>>, vector<8x128xf32>,
    } else {
    }
    %c0 = arith.constant 0 : index
    %c0_1 = arith.constant 0 : index
    %c0_2 = arith.constant 0 : index
    %3 = vector.load %arg4[%c0, %c0_1, %c0_2] : memref<2x128x128xf32, #tpu.memory_space<vmem>>, vector<1x128x128xf32>
    %4 = vector.shape_cast %3 : vector<1x128x128xf32> to vector<128x128xf32>
    %c1 = arith.constant 1 : index
    %c0_3 = arith.constant 0 : index
    %c0_4 = arith.constant 0 : index
    %5 = vector.load %arg4[%c1, %c0_3, %c0_4] : memref<2x128x128xf32, #tpu.memory_space<vmem>>, vector<1x128x128xf32>
    %6 = vector.shape_cast %5 : vector<1x128x128xf32> to vector<128x128xf32>
    %7 = arith.subf %4, %6 : vector<128x128xf32>
    %c0_5 = arith.constant 0 : index
    %c0_6 = arith.constant 0 : index
    %8 = vector.load %arg8[%c0_5, %c0_6] : memref<8x128xf32, #tpu.memory_space<vmem>>, vector<8x128xf32>
    %c0_7 = arith.constant 0 : index
    %c0_8 = arith.constant 0 : index
    %9 = vector.load %arg3[%c0_7, %c0_8] : memref<8x128xf32, #tpu.memory_space<vmem>>, vector<8x128xf32>
    %cst = arith.constant dense<0.000000e+00> : vector<8x128xf32>
    %10 = tpu.matmul %9, %7, %cst {dimension_numbers = #tpu.dot_dimension_numbers<[1], [0], [0], [1], [0, 0, 1, 1], [], []>} : vector<8x128xf32>, vector<128x128xf32>, vector<8x128xf32> -> vector<8x128xf32>
    %11 = arith.addf %8, %10 : vector<8x128xf32>
    %c0_9 = arith.constant 0 : index
    %c0_10 = arith.constant 0 : index
    %12 = vector.load %arg8[%c0_9, %c0_10] : memref<8x128xf32, #tpu.memory_space<vmem>>, vector<8x128xf32>
    tpu.vector_store %arg8[%c0_9, %c0_10], %11 {strides = array<i32>} : memref<8x128xf32, #tpu.memory_space<vmem>>, vector<8x128xf32>,
    %c0_i32_11 = arith.constant 0 : i32
    %13 = arith.cmpi eq, %arg2, %c0_i32_11 : i32
    %14 = arith.extui %13 : i1 to i32
    %c0_i32_12 = arith.constant 0 : i32
    %15 = arith.cmpi ne, %14, %c0_i32_12 : i32
    scf.if %15 {
      %c0_13 = arith.constant 0 : index
      %c0_14 = arith.constant 0 : index
      %16 = vector.load %arg8[%c0_13, %c0_14] : memref<8x128xf32, #tpu.memory_space<vmem>>, vector<8x128xf32>
      %c0_15 = arith.constant 0 : index
      %c0_16 = arith.constant 0 : index
      %17 = vector.load %arg5[%c0_15, %c0_16] : memref<1x128xf32, #tpu.memory_space<vmem>>, vector<1x128xf32>
      %18 = vector.broadcast %17 : vector<1x128xf32> to vector<8x128xf32>
      %19 = arith.mulf %16, %18 : vector<8x128xf32>
      %c0_17 = arith.constant 0 : index
      %c0_18 = arith.constant 0 : index
      %20 = vector.load %arg6[%c0_17, %c0_18] : memref<1x128xf32, #tpu.memory_space<vmem>>, vector<1x128xf32>
      %21 = vector.broadcast %20 : vector<1x128xf32> to vector<8x128xf32>
      %22 = arith.addf %19, %21 : vector<8x128xf32>
      %c0_19 = arith.constant 0 : index
      %c0_20 = arith.constant 0 : index
      %23 = vector.load %arg7[%c0_19, %c0_20] : memref<8x128xf32, #tpu.memory_space<vmem>>, vector<8x128xf32>
      tpu.vector_store %arg7[%c0_19, %c0_20], %22 {strides = array<i32>} : memref<8x128xf32, #tpu.memory_space<vmem>>, vector<8x128xf32>,
    } else {
    }
    return
  }
  func.func @transform_0(%arg0: i32, %arg1: i32, %arg2: i32) -> (i32, i32) {
    %c0_i32 = arith.constant 0 : i32
    return %arg0, %arg2 : i32, i32
  }
  func.func @transform_1(%arg0: i32, %arg1: i32, %arg2: i32) -> (i32, i32, i32) {
    %c0_i32 = arith.constant 0 : i32
    %c0_i32_0 = arith.constant 0 : i32
    return %c0_i32, %arg2, %arg1 : i32, i32, i32
  }
  func.func @transform_2(%arg0: i32, %arg1: i32, %arg2: i32) -> (i32, i32) {
    %c0_i32 = arith.constant 0 : i32
    %c0_i32_0 = arith.constant 0 : i32
    return %c0_i32, %arg1 : i32, i32
  }
  func.func @transform_3(%arg0: i32, %arg1: i32, %arg2: i32) -> (i32, i32) {
    %c0_i32 = arith.constant 0 : i32
    %c0_i32_0 = arith.constant 0 : i32
    return %c0_i32, %arg1 : i32, i32
  }
  func.func @transform_4(%arg0: i32, %arg1: i32, %arg2: i32) -> (i32, i32) {
    %c0_i32 = arith.constant 0 : i32
    return %arg0, %arg1 : i32, i32
  }
}

</mosaic_0001>

<llo_original>
// kernel: tpu_custom_call.1
$region0: #{tpu_custom_call.1}
  #allocation0 [shape = 'u32[]', space=smem, size = 0x4, offset = 0x4, fixed_abs, tag = 'smem constant byte address 0x4 - core index']
  #allocation1 [shape = 'u32[144,128]{1,0:T(1,128)}', space=vmem, size = 0x12000, scoped, tag = 'internal scratch']
  #allocation2 [shape = 'f32[8,128]{1,0:T(8,128)}', space=vmem, size = 0x1000, scoped, tag = 'scratch operand']
  %s0 = inlined_call_operand.hbm [shape: f32[8,128], index: 0, kind: input, shape index: {}]
  %s1 = inlined_call_operand.hbm [shape: f32[2,128,128], index: 1, kind: input, shape index: {}]
  %s2 = inlined_call_operand.vmem [shape: f32[1,128], index: 2, kind: input, shape index: {}]
  %s3 = inlined_call_operand.vmem [shape: f32[1,128], index: 3, kind: input, shape index: {}]
  %s4 = inlined_call_operand.hbm [shape: f32[8,128], index: 4, kind: output, shape index: {}]
  %s5 = sld [smem:[#allocation0]]
  $region42: #{tpu_custom_call.1} parent=0
    _
  %s7 = ssub.s32 1, %s5
  %s8 = scalar_select 0, %s7, %s5
  $region1: #{tpu_custom_call.1} parent=0
    #allocation3 [shape = 'u8[4096]{0}', space=vmem, size = 0x1000, scoped, tag = 'input window, operand 0, single buffered']
    #allocation4 [shape = 's32[1]{0}', space=sflag, size = 0x4, scoped, tag = 'scoped memory for tpu_custom_call.1']
    #allocation5 [shape = 's32[1]{0}', space=sflag, size = 0x4, scoped, tag = 'scoped memory for tpu_custom_call.1']
    #allocation6 [shape = 'u8[131072]{0}', space=vmem, size = 0x20000, scoped, tag = 'input window, operand 1, single buffered']
    #allocation7 [shape = 's32[1]{0}', space=sflag, size = 0x4, scoped, tag = 'scoped memory for tpu_custom_call.1']
    #allocation8 [shape = 'u8[4096]{0}', space=vmem, size = 0x1000, scoped, tag = 'output window, operand 0, single buffered']
    %9 = vsyncpa [#allocation4], 0
    %10 = vsyncpa [#allocation7], 0
    %11 = vsyncpa [#allocation5], 0
    // Predicated region
    $region2: #{tpu_custom_call.1} parent=1 // pred_check
      _
    $region3: #{tpu_custom_call.1} parent=1 // pred_check_branch
      %13 = sbr.rel (0) target = $region5
    $region4: #{tpu_custom_call.1} parent=1 // pred_region
      %s15 = ssub.s32 128, 128
      %16 = vsyncadd [#allocation4], %s15
      %s18 = sshll.u32 [#allocation3], 4
      %s19 = int_to_ptr.vmem [resolvable:$true] %s18
      %21 = dma.hbm_to_vmem [thread:$0]  %s0, 128, %s19, [#allocation4]
    $region5: #{tpu_custom_call.1} parent=1 // pred_fallthru
      _
    // Predicated region
    $region6: #{tpu_custom_call.1} parent=1 // pred_check
      _
    $region7: #{tpu_custom_call.1} parent=1 // pred_check_branch
      %23 = sbr.rel (0) target = $region9
    $region8: #{tpu_custom_call.1} parent=1 // pred_region
      %s25 = ssub.s32 4096, 4096
      %26 = vsyncadd [#allocation7], %s25
      %s27 = sshll.u32 [#allocation6], 4
      %s28 = int_to_ptr.vmem [resolvable:$true] %s27
      %33 = dma.hbm_to_vmem [thread:$0]  %s1, 4096, %s28, [#allocation7], 128, 128, 8
    $region9: #{tpu_custom_call.1} parent=1 // pred_fallthru
      _
    // Predicated region
    $region10: #{tpu_custom_call.1} parent=1 // pred_check
      _
    $region11: #{tpu_custom_call.1} parent=1 // pred_check_branch
      %35 = sbr.rel (0) target = $region13
    $region12: #{tpu_custom_call.1} parent=1 // pred_region
      _
    $region13: #{tpu_custom_call.1} parent=1 // pred_fallthru
      _
    // Predicated region
    $region14: #{tpu_custom_call.1} parent=1 // pred_check
      _
    $region15: #{tpu_custom_call.1} parent=1 // pred_check_branch
      %37 = sbr.rel (0) target = $region17
    $region16: #{tpu_custom_call.1} parent=1 // pred_region
      _
    $region17: #{tpu_custom_call.1} parent=1 // pred_fallthru
      _
    // Predicated region
    $region18: #{tpu_custom_call.1} parent=1 // pred_check
      _
    $region19: #{tpu_custom_call.1} parent=1 // pred_check_branch
      %39 = sbr.rel (0) target = $region21
    $region20: #{tpu_custom_call.1} parent=1 // pred_region
      %40 = dma.done [#allocation4], 128
    $region21: #{tpu_custom_call.1} parent=1 // pred_fallthru
      _
    // Predicated region
    $region22: #{tpu_custom_call.1} parent=1 // pred_check
      _
    $region23: #{tpu_custom_call.1} parent=1 // pred_check_branch
      %42 = sbr.rel (0) target = $region25
    $region24: #{tpu_custom_call.1} parent=1 // pred_region
      %43 = dma.done [#allocation7], 4096
    $region25: #{tpu_custom_call.1} parent=1 // pred_fallthru
      _
    %p44 = scmp.eq.s32.totalorder 0, 0
    // Predicated region
    $region26: #{tpu_custom_call.1} parent=1 // pred_check
      %p45 = pneg %p44
    $region27: #{tpu_custom_call.1} parent=1 // pred_check_branch
      %47 = sbr.rel (%p45) target = $region29
    $region28: #{tpu_custom_call.1} parent=1 // pred_region
      %48 = vst [vmem:[#allocation2] sm:$0xff] 0.0
    $region29: #{tpu_custom_call.1} parent=1 // pred_fallthru
      _
    %v49 = vld [vmem:[#allocation6] sm:$0xff]
    %v50 = vld [vmem:[#allocation6 + $0x8] sm:$0xff]
    %v51 = vld [vmem:[#allocation6 + $0x10] sm:$0xff]
    %v52 = vld [vmem:[#allocation6 + $0x18] sm:$0xff]
    %v53 = vld [vmem:[#allocation6 + $0x20] sm:$0xff]
    %v54 = vld [vmem:[#allocation6 + $0x28] sm:$0xff]
    %v55 = vld [vmem:[#allocation6 + $0x30] sm:$0xff]
    %v56 = vld [vmem:[#allocation6 + $0x38] sm:$0xff]
    %v57 = vld [vmem:[#allocation6 + $0x40] sm:$0xff]
    %v58 = vld [vmem:[#allocation6 + $0x48] sm:$0xff]
    %v59 = vld [vmem:[#allocation6 + $0x50] sm:$0xff]
    %v60 = vld [vmem:[#allocation6 + $0x58] sm:$0xff]
    %v61 = vld [vmem:[#allocation6 + $0x60] sm:$0xff]
    %v62 = vld [vmem:[#allocation6 + $0x68] sm:$0xff]
    %v63 = vld [vmem:[#allocation6 + $0x70] sm:$0xff]
    %v64 = vld [vmem:[#allocation6 + $0x78] sm:$0xff]
    %s65 = scalar_lea.vmem [#allocation6], 128
    %v66 = vld [vmem:[%s65] sm:$0xff]
    %v67 = vld [vmem:[%s65 + $0x8] sm:$0xff]
    %v68 = vld [vmem:[%s65 + $0x10] sm:$0xff]
    %v69 = vld [vmem:[%s65 + $0x18] sm:$0xff]
    %v70 = vld [vmem:[%s65 + $0x20] sm:$0xff]
    %v71 = vld [vmem:[%s65 + $0x28] sm:$0xff]
    %v72 = vld [vmem:[%s65 + $0x30] sm:$0xff]
    %v73 = vld [vmem:[%s65 + $0x38] sm:$0xff]
    %v74 = vld [vmem:[%s65 + $0x40] sm:$0xff]
    %v75 = vld [vmem:[%s65 + $0x48] sm:$0xff]
    %v76 = vld [vmem:[%s65 + $0x50] sm:$0xff]
    %v77 = vld [vmem:[%s65 + $0x58] sm:$0xff]
    %v78 = vld [vmem:[%s65 + $0x60] sm:$0xff]
    %v79 = vld [vmem:[%s65 + $0x68] sm:$0xff]
    %v80 = vld [vmem:[%s65 + $0x70] sm:$0xff]
    %v81 = vld [vmem:[%s65 + $0x78] sm:$0xff]
    %v82 = vsub.f32 %v49, %v66
    %v83 = vsub.f32 %v50, %v67
    %v84 = vsub.f32 %v51, %v68
    %v85 = vsub.f32 %v52, %v69
    %v86 = vsub.f32 %v53, %v70
    %v87 = vsub.f32 %v54, %v71
    %v88 = vsub.f32 %v55, %v72
    %v89 = vsub.f32 %v56, %v73
    %v90 = vsub.f32 %v57, %v74
    %v91 = vsub.f32 %v58, %v75
    %v92 = vsub.f32 %v59, %v76
    %v93 = vsub.f32 %v60, %v77
    %v94 = vsub.f32 %v61, %v78
    %v95 = vsub.f32 %v62, %v79
    %v96 = vsub.f32 %v63, %v80
    %v97 = vsub.f32 %v64, %v81
    %v98 = vld [vmem:[#allocation2] sm:$0xff]
    %v99 = vld [vmem:[#allocation3] sm:$0xff]
    %100 = vmatprep.subr.mxu0 0.0
    %101 = vmatpush1.msra.mxu0 %v97
    %102 = vmatprep.subr.mxu0 0.0
    %103 = vmatpush1.msra.mxu0 %v96
    %104 = vmatprep.subr.mxu0 0.0
    %105 = vmatpush1.msra.mxu0 %v95
    %106 = vmatprep.subr.mxu0 0.0
    %107 = vmatpush1.msra.mxu0 %v94
    %108 = vmatprep.subr.mxu0 0.0
    %109 = vmatpush1.msra.mxu0 %v93
    %110 = vmatprep.subr.mxu0 0.0
    %111 = vmatpush1.msra.mxu0 %v92
    %112 = vmatprep.subr.mxu0 0.0
    %113 = vmatpush1.msra.mxu0 %v91
    %114 = vmatprep.subr.mxu0 0.0
    %115 = vmatpush1.msra.mxu0 %v90
    %116 = vmatprep.subr.mxu0 0.0
    %117 = vmatpush1.msra.mxu0 %v89
    %118 = vmatprep.subr.mxu0 0.0
    %119 = vmatpush1.msra.mxu0 %v88
    %120 = vmatprep.subr.mxu0 0.0
    %121 = vmatpush1.msra.mxu0 %v87
    %122 = vmatprep.subr.mxu0 0.0
    %123 = vmatpush1.msra.mxu0 %v86
    %124 = vmatprep.subr.mxu0 0.0
    %125 = vmatpush1.msra.mxu0 %v85
    %126 = vmatprep.subr.mxu0 0.0
    %127 = vmatpush1.msra.mxu0 %v84
    %128 = vmatprep.subr.mxu0 0.0
    %129 = vmatpush1.msra.mxu0 %v83
    %130 = vmatprep.subr.mxu0 0.0
    %131 = vmatpush1.msra.mxu0 %v82
    %132 = vmatprep.subr.mxu0 0.0
    %133 = vmatpush2.msra.mxu0 0.0
    %134 = vmatprep.subr.mxu0 0.0
    %135 = vmatpush2.msra.mxu0 0.0
    %136 = vmatprep.subr.mxu0 0.0
    %137 = vmatpush2.msra.mxu0 0.0
    %138 = vmatprep.subr.mxu0 0.0
    %139 = vmatpush2.msra.mxu0 0.0
    %140 = vmatprep.subr.mxu0 0.0
    %141 = vmatpush2.msra.mxu0 0.0
    %142 = vmatprep.subr.mxu0 0.0
    %143 = vmatpush2.msra.mxu0 0.0
    %144 = vmatprep.subr.mxu0 0.0
    %145 = vmatpush2.msra.mxu0 0.0
    %146 = vmatprep.subr.mxu0 0.0
    %147 = vmatpush2.msra.mxu0 0.0
    %148 = vmatprep.subr.mxu0 0.0
    %149 = vmatpush2.msra.mxu0 0.0
    %150 = vmatprep.subr.mxu0 0.0
    %151 = vmatpush2.msra.mxu0 0.0
    %152 = vmatprep.subr.mxu0 0.0
    %153 = vmatpush2.msra.mxu0 0.0
    %154 = vmatprep.subr.mxu0 0.0
    %155 = vmatpush2.msra.mxu0 0.0
    %156 = vmatprep.subr.mxu0 0.0
    %157 = vmatpush2.msra.mxu0 0.0
    %158 = vmatprep.subr.mxu0 0.0
    %159 = vmatpush2.msra.mxu0 0.0
    %160 = vmatprep.subr.mxu0 0.0
    %161 = vmatpush2.msra.mxu0 0.0
    %162 = vmatprep.subr.mxu0 0.0
    %163 = vmatpush2.msra.mxu0 0.0
    %164 = vmatprep.mubr.f32.mxu0 0.0
    %165 = vmatmul.mubr.f32.gmra.mxu0 %v99
    %v166 = vpop.f32.mrf.mxu0
    %v167 = vadd.f32 0.0, %v166
    %v168 = vpop.f32.mrf.mxu0
    %169 = vdwg.mxu0
    %v170 = vadd.f32 %v98, %v167
    %171 = vst [vmem:[#allocation2] sm:$0xff] %v170
    // Predicated region
    $region30: #{tpu_custom_call.1} parent=1 // pred_check
      %p172 = pneg %p44
    $region31: #{tpu_custom_call.1} parent=1 // pred_check_branch
      %174 = sbr.rel (%p172) target = $region33
    $region32: #{tpu_custom_call.1} parent=1 // pred_region
      %v175 = vld [vmem:[#allocation2] sm:$0xff]
      %v176 = vld [vmem:[%s2] sm:$0x1]
      %v178 = vlaneseq
      %v179 = vshrl.u32 %v178, 7
      %v180 = vsub.s32 0, %v179
      %v181 = vrot.slane %v176, %v180
      %v183 = vmul.f32 %v175, %v181
      %v184 = vld [vmem:[%s3] sm:$0x1]
      %v186 = vlaneseq
      %v187 = vshrl.u32 %v186, 7
      %v188 = vsub.s32 0, %v187
      %v189 = vrot.slane %v184, %v188
      %v191 = vadd.f32 %v183, %v189
      %192 = vst [vmem:[#allocation8] sm:$0xff] %v191
    $region33: #{tpu_custom_call.1} parent=1 // pred_fallthru
      _
    // Predicated region
    $region34: #{tpu_custom_call.1} parent=1 // pred_check
      _
    $region35: #{tpu_custom_call.1} parent=1 // pred_check_branch
      %194 = sbr.rel (0) target = $region37
    $region36: #{tpu_custom_call.1} parent=1 // pred_region
      %s196 = ssub.s32 128, 128
      %197 = vsyncadd [#allocation5], %s196
      %s199 = sshll.u32 [#allocation8], 4
      %s200 = int_to_ptr.vmem [resolvable:$true] %s199
      %202 = dma.vmem_to_hbm [thread:$0]  %s200, 128, %s4, [#allocation5]
    $region37: #{tpu_custom_call.1} parent=1 // pred_fallthru
      _
    // Predicated region
    $region38: #{tpu_custom_call.1} parent=1 // pred_check
      _
    $region39: #{tpu_custom_call.1} parent=1 // pred_check_branch
      %204 = sbr.rel (0) target = $region41
    $region40: #{tpu_custom_call.1} parent=1 // pred_region
      %205 = dma.done [#allocation5], 128
    $region41: #{tpu_custom_call.1} parent=1 // pred_fallthru
      _
    %206 = vsyncpa [#allocation4], 1
    %207 = vsyncpa [#allocation7], 1
    %208 = vsyncpa [#allocation5], 1

</llo_original>
